<compile_context>
chip_gen: v7x
topology: tpu7x:2x2x1
jax: 0.10.0
libtpu: 0.0.40
codegen_flags: <defaults>
</compile_context>

<pallas_src>
import functools

import jax
import jax.numpy as jnp
from jax.experimental import pallas as pl
from jax.experimental.pallas import tpu as pltpu


def _round_up(x, m):
    return ((x + m - 1) // m) * m


def _pick_tile(dim_p, target):
    """Largest multiple-of-128 divisor of dim_p (itself a multiple of 128) <= target."""
    if dim_p <= target:
        return dim_p
    t = (target // 128) * 128
    while t >= 128:
        if dim_p % t == 0:
            return t
        t -= 128
    return 128  # dim_p is a multiple of 128, so 128 always divides it


def _default_vmem_budget():
    """~85% of this generation's VMEM; conservative fallback if unqueryable."""
    try:
        cap = pltpu.get_tpu_info().vmem_capacity_bytes
        return int(cap * 0.85)
    except Exception:
        return 56 * 1024 * 1024  # safe on v5e/v6e (128MiB) and v7x (64MiB)


def _residual_kernel(x_ref, gamma_ref, beta_ref, w_ref, b_ref, o_ref,
                     normed_ref, *maybe_acc,
                     eps, inv_dim, n_k_tiles, tk, tn, n_n_tiles, acc_in_out):
    """Fused LayerNorm -> Linear (bf16 MXU, f32 acc) -> (dropout=id) -> residual."""
    acc_ref = None if acc_in_out else maybe_acc[0]
    j = pl.program_id(1)          # N (output-feature) tile
    k = pl.program_id(2)          # K (reduction) tile, innermost
    rt = x_ref.shape[0]

    # --- LayerNorm once per row tile (first (j, k) step), chunked over K so the
    #     full (rt, dim) f32 tensor is never live (bounded vreg pressure). ---
    @pl.when(jnp.logical_and(j == 0, k == 0))
    def _():
        # Pass 1: row statistics. Padded lanes hold zeros and we divide by the
        # true dim (inv_dim), so feature-dim padding does not skew mean/var.
        s = jnp.zeros((rt, 1), jnp.float32)
        ss = jnp.zeros((rt, 1), jnp.float32)
        for kk in range(n_k_tiles):
            xc = x_ref[:, kk * tk:(kk + 1) * tk].astype(jnp.float32)
            s = s + jnp.sum(xc, axis=-1, keepdims=True)
            ss = ss + jnp.sum(xc * xc, axis=-1, keepdims=True)
        mu = s * inv_dim
        var = ss * inv_dim - mu * mu                       # biased var (torch LN)
        inv = jax.lax.rsqrt(var + eps)
        # Pass 2: normalize + affine per K chunk, cast to bf16, cache for the MXU.
        # (gamma/beta are zero on padded lanes -> normed is 0 there.)
        for kk in range(n_k_tiles):
            xc = x_ref[:, kk * tk:(kk + 1) * tk].astype(jnp.float32)
            g = gamma_ref[:, kk * tk:(kk + 1) * tk].astype(jnp.float32)
            bt = beta_ref[:, kk * tk:(kk + 1) * tk].astype(jnp.float32)
            normed_ref[kk] = ((xc - mu) * inv * g + bt).astype(jnp.bfloat16)

    # --- residual slice of x for this N tile: read from the resident full-row
    #     x block instead of a second (duplicate) HBM-streamed input. ---
    def residual_f32():
        if n_n_tiles == 1:
            res = x_ref[...]                       # tn == padded dim
        else:
            col = pl.multiple_of(j * tn, 128)      # tn is a multiple of 128
            res = x_ref[:, pl.ds(col, tn)]
        return res.astype(jnp.float32)

    # f32 output: accumulate straight into o_ref (resident across k); otherwise
    # accumulate into an f32 scratch and cast once at the end of the K loop.
    acc = o_ref if acc_in_out else acc_ref

    @pl.when(k == 0)
    def _():
        # init with residual + bias (dropout = identity in eval mode)
        acc[...] = residual_f32() + b_ref[...].astype(jnp.float32)

    acc[...] += jnp.dot(normed_ref[k], w_ref[...],
                        preferred_element_type=jnp.float32)

    if not acc_in_out:
        @pl.when(k == pl.num_programs(2) - 1)
        def _():
            o_ref[...] = acc_ref[...].astype(o_ref.dtype)


def residual_connection_group(x, gamma, beta, w, b, *, eps,
                              row_tile=1024, n_tile=1024, k_tile=1024,
                              vmem_budget_bytes=None):
    """x: [batch, seq, dim]; gamma/beta/b: [dim]; w: [dim, dim] (y = LN(x) @ w + b)."""
    batch, seq, dim = x.shape
    rows = batch * seq
    out_dtype = x.dtype
    x_itemsize = jnp.dtype(x.dtype).itemsize
    out_itemsize = jnp.dtype(out_dtype).itemsize
    acc_in_out = (out_dtype == jnp.float32)

    # Feature dim padded to a multiple of 128 -> all tiles lane-dense & (8,128)-legal.
    dim_p = _round_up(dim, 128)
    budget = (int(vmem_budget_bytes) if vmem_budget_bytes is not None
              else _default_vmem_budget())

    tn = _pick_tile(dim_p, n_tile)
    tk = _pick_tile(dim_p, k_tile)

    def vmem_estimate(rt_, tn_, tk_):
        nkt = dim_p // tk_
        return (2 * rt_ * dim_p * x_itemsize          # x row block (double-buffered)
                + nkt * rt_ * tk_ * 2                 # normed bf16 cache
                + 2 * tk_ * tn_ * 2                   # W tile (bf16, double-buffered)
                + 2 * rt_ * tn_ * out_itemsize        # output block (double-buffered)
                + (0 if acc_in_out else rt_ * tn_ * 4)  # f32 accumulator (non-f32 out)
                + 4 * dim_p * 4 + 4 * tn_ * 4         # gamma/beta/bias buffers
                + 4 * 1024 * 1024)                    # compiler/DMA scratch headroom

    # Row tiling: biggest tile fitting the VMEM budget (W traffic scales with
    # rows/row_tile), padded rows instead of tiny tiles.
    rt = _round_up(min(row_tile, _round_up(rows, 8)), 8)
    while rt > 8 and vmem_estimate(rt, tn, tk) > budget:
        rt = _round_up(rt // 2, 8)
    while (tn > 128 or tk > 128) and vmem_estimate(rt, tn, tk) > budget:
        if tk > 128:
            tk = _pick_tile(dim_p, tk // 2)
        elif tn > 128:
            tn = _pick_tile(dim_p, tn // 2)
    # Prefer >= 2 row tiles so both v7x TensorCores get work on the parallel axis.
    while rt > 8 and _round_up(rows, rt) // rt < 2:
        rt = _round_up(rt // 2, 8)

    rows_p = _round_up(rows, rt)
    n_k_tiles = dim_p // tk
    n_n_tiles = dim_p // tn

    # --- host-side padding / layout ---
    x2 = x.reshape(rows, dim)
    pad_r, pad_d = rows_p - rows, dim_p - dim
    if pad_r or pad_d:
        x2 = jnp.pad(x2, ((0, pad_r), (0, pad_d)))

    def _pad_vec(v):
        v = v.reshape(1, dim)
        return jnp.pad(v, ((0, 0), (0, pad_d))) if pad_d else v

    gamma2 = _pad_vec(gamma)          # zero-padded -> normed is 0 on padded lanes
    beta2 = _pad_vec(beta)
    b2 = _pad_vec(b)
    w2 = jnp.pad(w, ((0, pad_d), (0, pad_d))) if pad_d else w
    w_bf16 = w2.astype(jnp.bfloat16)  # halve W footprint; MXU-native dtype

    kernel = functools.partial(
        _residual_kernel, eps=float(eps), inv_dim=1.0 / dim,
        n_k_tiles=n_k_tiles, tk=tk, tn=tn, n_n_tiles=n_n_tiles,
        acc_in_out=acc_in_out)

    grid = (rows_p // rt, n_n_tiles, n_k_tiles)

    scratch = [pltpu.VMEM((n_k_tiles, rt, tk), jnp.bfloat16)]   # normed cache
    if not acc_in_out:
        scratch.append(pltpu.VMEM((rt, tn), jnp.float32))       # f32 accumulator

    # Cost estimate: W is re-streamed from HBM once per row tile; x read once;
    # output written once.
    w_streams = rows_p // rt
    cost = pl.CostEstimate(
        flops=2 * rows_p * dim_p * dim_p,
        transcendentals=rows_p,
        bytes_accessed=(rows_p * dim_p * x_itemsize
                        + rows_p * dim_p * out_itemsize
                        + w_streams * dim_p * dim_p * 2
                        + 3 * dim_p * 4),
    )

    out2 = pl.pallas_call(
        kernel,
        out_shape=jax.ShapeDtypeStruct((rows_p, dim_p), out_dtype),
        grid_spec=pltpu.PrefetchScalarGridSpec(
            num_scalar_prefetch=0,
            grid=grid,
            in_specs=[
                # x rows, full (padded) feature dim: LayerNorm stats + residual;
                # resident across (j, k) -> x streamed from HBM exactly once.
                pl.BlockSpec((rt, dim_p), lambda i, j, k: (i, 0)),
                pl.BlockSpec((1, dim_p), lambda i, j, k: (0, 0)),   # gamma
                pl.BlockSpec((1, dim_p), lambda i, j, k: (0, 0)),   # beta
                pl.BlockSpec((tk, tn), lambda i, j, k: (k, j)),     # W tile (bf16)
                pl.BlockSpec((1, tn), lambda i, j, k: (0, j)),      # bias tile
            ],
            out_specs=pl.BlockSpec((rt, tn), lambda i, j, k: (i, j)),
            scratch_shapes=scratch,
        ),
        compiler_params=pltpu.CompilerParams(
            dimension_semantics=("parallel", "arbitrary", "arbitrary"),
            vmem_limit_bytes=int(budget),
        ),
        cost_estimate=cost,
    )(x2, gamma2, beta2, w_bf16, b2)

    if pad_r or pad_d:
        out2 = out2[:rows, :dim]
    return out2.reshape(batch, seq, dim)


def _reference(x, gamma, beta, w, b, eps):
    x = x.astype(jnp.float32)
    mu = jnp.mean(x, axis=-1, keepdims=True)
    var = jnp.mean((x - mu) ** 2, axis=-1, keepdims=True)
    normed = (x - mu) / jnp.sqrt(var + eps) * gamma + beta
    y = jnp.einsum("bsd,de->bse", normed, w) + b
    return x + y


if __name__ == "__main__":
    eps = 1e-5
    key = jax.random.PRNGKey(0)
    kx, kw, kb, kx2, kw2, kb2 = jax.random.split(key, 6)

    # --- Test 1: canonical small shape (f32, dim < 128 -> padded feature dim) ---
    batch, seq, dim = 2, 8, 32
    x = jax.random.normal(kx, (batch, seq, dim), dtype=jnp.float32)
    gamma = jnp.ones((dim,), dtype=jnp.float32)       # torch LayerNorm default init
    beta = jnp.zeros((dim,), dtype=jnp.float32)
    w = jax.random.normal(kw, (dim, dim), dtype=jnp.float32) * 0.05
    b = jax.random.normal(kb, (dim,), dtype=jnp.float32) * 0.05

    # TODO(synk): training-mode dropout (prng mask) not implemented; eval-mode
    # dropout is the identity, which is what is computed here.
    out = residual_connection_group(x, gamma, beta, w, b, eps=eps)
    out = jax.block_until_ready(out)
    ref = _reference(x, gamma, beta, w, b, eps)
    assert out.shape == x.shape
    # Tolerance relaxed vs. pure-f32 because the matmul operands are bf16
    # (f32 accumulate); LayerNorm and the residual add remain f32.
    assert jnp.allclose(out, ref, atol=1e-2, rtol=1e-2), "mismatch (test 1)"

    # --- Test 2: multi-K-tile reduction + multiple row tiles + row padding ---
    b2_, s2_, d2_ = 2, 24, 256
    x_m = jax.random.normal(kx2, (b2_, s2_, d2_), dtype=jnp.float32)
    gamma_m = jnp.ones((d2_,), dtype=jnp.float32)
    beta_m = jnp.zeros((d2_,), dtype=jnp.float32)
    w_m = jax.random.normal(kw2, (d2_, d2_), dtype=jnp.float32) * 0.05
    b_m = jax.random.normal(kb2, (d2_,), dtype=jnp.float32) * 0.05
    out_m = residual_connection_group(x_m, gamma_m, beta_m, w_m, b_m, eps=eps,
                                      n_tile=256, k_tile=128)
    out_m = jax.block_until_ready(out_m)
    ref_m = _reference(x_m, gamma_m, beta_m, w_m, b_m, eps)
    assert out_m.shape == x_m.shape
    assert jnp.allclose(out_m, ref_m, atol=2e-2, rtol=2e-2), "mismatch (test 2)"

    # --- Test 3: bf16 activations/output -> f32 accumulator-scratch path ---
    x_bf = jax.random.normal(kx, (2, 16, dim), dtype=jnp.bfloat16)
    out_bf = residual_connection_group(x_bf, gamma, beta, w, b, eps=eps)
    out_bf = jax.block_until_ready(out_bf)
    ref_bf = _reference(x_bf, gamma, beta, w, b, eps)
    assert out_bf.shape == x_bf.shape
    assert jnp.allclose(out_bf.astype(jnp.float32), ref_bf,
                        atol=5e-2, rtol=5e-2), "mismatch (test 3)"

    print("KERNEL_OK")
</pallas_src>

<mosaic_0001>
module attributes {stable_mosaic.version = 11 : i64} {
  func.func @_residual_kernel(%arg0: i32, %arg1: i32, %arg2: i32, %arg3: memref<8x128xf32, #tpu.memory_space<vmem>>, %arg4: memref<1x128xf32, #tpu.memory_space<vmem>>, %arg5: memref<1x128xf32, #tpu.memory_space<vmem>>, %arg6: memref<128x128xbf16, #tpu.memory_space<vmem>>, %arg7: memref<1x128xf32, #tpu.memory_space<vmem>>, %arg8: memref<8x128xf32, #tpu.memory_space<vmem>>, %arg9: memref<1x8x128xbf16, #tpu.memory_space<vmem>>) attributes {dimension_semantics = [#tpu.dimension_semantics<parallel>, #tpu.dimension_semantics<arbitrary>, #tpu.dimension_semantics<arbitrary>], iteration_bounds = array<i64: 2, 1, 1>, scalar_prefetch = 0 : i64, scratch_operands = 1 : i64, tpu.core_type = #tpu.core_type<tc>, window_params = [{transform_indices = @transform_0, window_bounds = array<i64: 8, 128>}, {pipeline_mode = #tpu.pipeline_mode<synchronous>, transform_indices = @transform_1, window_bounds = array<i64: 1, 128>}, {pipeline_mode = #tpu.pipeline_mode<synchronous>, transform_indices = @transform_2, window_bounds = array<i64: 1, 128>}, {transform_indices = @transform_3, window_bounds = array<i64: 128, 128>}, {transform_indices = @transform_4, window_bounds = array<i64: 1, 128>}, {transform_indices = @transform_5, window_bounds = array<i64: 8, 128>}]} {
    %c0_i32 = arith.constant 0 : i32
    %0 = arith.cmpi eq, %arg1, %c0_i32 : i32
    %c0_i32_0 = arith.constant 0 : i32
    %1 = arith.cmpi eq, %arg2, %c0_i32_0 : i32
    %2 = arith.andi %0, %1 : i1
    %3 = arith.extui %2 : i1 to i32
    %c0_i32_1 = arith.constant 0 : i32
    %4 = arith.cmpi ne, %3, %c0_i32_1 : i32
    scf.if %4 {
      %cst_11 = arith.constant 0.000000e+00 : f32
      %16 = vector.broadcast %cst_11 : f32 to vector<8x1xf32>
      %cst_12 = arith.constant 0.000000e+00 : f32
      %17 = vector.broadcast %cst_12 : f32 to vector<8x1xf32>
      %c0_13 = arith.constant 0 : index
      %c0_14 = arith.constant 0 : index
      %18 = vector.load %arg3[%c0_13, %c0_14] : memref<8x128xf32, #tpu.memory_space<vmem>>, vector<8x128xf32>
      %cst_15 = arith.constant dense<0.000000e+00> : vector<8xf32>
      %19 = vector.multi_reduction <add>, %18, %cst_15 [1] : vector<8x128xf32> to vector<8xf32>
      %20 = vector.shape_cast %19 : vector<8xf32> to vector<8x1xf32>
      %21 = arith.addf %16, %20 : vector<8x1xf32>
      %22 = arith.mulf %18, %18 : vector<8x128xf32>
      %cst_16 = arith.constant dense<0.000000e+00> : vector<8xf32>
      %23 = vector.multi_reduction <add>, %22, %cst_16 [1] : vector<8x128xf32> to vector<8xf32>
      %24 = vector.shape_cast %23 : vector<8xf32> to vector<8x1xf32>
      %25 = arith.addf %17, %24 : vector<8x1xf32>
      %cst_17 = arith.constant 3.125000e-02 : f32
      %26 = vector.broadcast %cst_17 : f32 to vector<8x1xf32>
      %27 = arith.mulf %21, %26 : vector<8x1xf32>
      %cst_18 = arith.constant 3.125000e-02 : f32
      %28 = vector.broadcast %cst_18 : f32 to vector<8x1xf32>
      %29 = arith.mulf %25, %28 : vector<8x1xf32>
      %30 = arith.mulf %27, %27 : vector<8x1xf32>
      %31 = arith.subf %29, %30 : vector<8x1xf32>
      %cst_19 = arith.constant 9.99999974E-6 : f32
      %32 = vector.broadcast %cst_19 : f32 to vector<8x1xf32>
      %33 = arith.addf %31, %32 : vector<8x1xf32>
      %34 = math.rsqrt %33 : vector<8x1xf32>
      %c0_20 = arith.constant 0 : index
      %c0_21 = arith.constant 0 : index
      %35 = vector.load %arg3[%c0_20, %c0_21] : memref<8x128xf32, #tpu.memory_space<vmem>>, vector<8x128xf32>
      %c0_22 = arith.constant 0 : index
      %c0_23 = arith.constant 0 : index
      %36 = vector.load %arg4[%c0_22, %c0_23] : memref<1x128xf32, #tpu.memory_space<vmem>>, vector<1x128xf32>
      %c0_24 = arith.constant 0 : index
      %c0_25 = arith.constant 0 : index
      %37 = vector.load %arg5[%c0_24, %c0_25] : memref<1x128xf32, #tpu.memory_space<vmem>>, vector<1x128xf32>
      %38 = vector.broadcast %27 : vector<8x1xf32> to vector<8x128xf32>
      %39 = arith.subf %35, %38 : vector<8x128xf32>
      %40 = vector.broadcast %34 : vector<8x1xf32> to vector<8x128xf32>
      %41 = arith.mulf %39, %40 : vector<8x128xf32>
      %42 = vector.broadcast %36 : vector<1x128xf32> to vector<8x128xf32>
      %43 = arith.mulf %41, %42 : vector<8x128xf32>
      %44 = vector.broadcast %37 : vector<1x128xf32> to vector<8x128xf32>
      %45 = arith.addf %43, %44 : vector<8x128xf32>
      %46 = arith.truncf %45 : vector<8x128xf32> to vector<8x128xbf16>
      %c0_26 = arith.constant 0 : index
      %c0_27 = arith.constant 0 : index
      %c0_28 = arith.constant 0 : index
      %47 = vector.load %arg9[%c0_26, %c0_27, %c0_28] : memref<1x8x128xbf16, #tpu.memory_space<vmem>>, vector<1x8x128xbf16>
      %48 = vector.shape_cast %47 : vector<1x8x128xbf16> to vector<8x128xbf16>
      %49 = vector.shape_cast %46 : vector<8x128xbf16> to vector<1x8x128xbf16>
      tpu.vector_store %arg9[%c0_26, %c0_27, %c0_28], %49 {strides = array<i32>} : memref<1x8x128xbf16, #tpu.memory_space<vmem>>, vector<1x8x128xbf16>,
    } else {
    }
    %c0_i32_2 = arith.constant 0 : i32
    %5 = arith.cmpi eq, %arg2, %c0_i32_2 : i32
    %6 = arith.extui %5 : i1 to i32
    %c0_i32_3 = arith.constant 0 : i32
    %7 = arith.cmpi ne, %6, %c0_i32_3 : i32
    scf.if %7 {
      %c0_11 = arith.constant 0 : index
      %c0_12 = arith.constant 0 : index
      %16 = vector.load %arg3[%c0_11, %c0_12] : memref<8x128xf32, #tpu.memory_space<vmem>>, vector<8x128xf32>
      %c0_13 = arith.constant 0 : index
      %c0_14 = arith.constant 0 : index
      %17 = vector.load %arg7[%c0_13, %c0_14] : memref<1x128xf32, #tpu.memory_space<vmem>>, vector<1x128xf32>
      %18 = vector.broadcast %17 : vector<1x128xf32> to vector<8x128xf32>
      %19 = arith.addf %16, %18 : vector<8x128xf32>
      %c0_15 = arith.constant 0 : index
      %c0_16 = arith.constant 0 : index
      %20 = vector.load %arg8[%c0_15, %c0_16] : memref<8x128xf32, #tpu.memory_space<vmem>>, vector<8x128xf32>
      tpu.vector_store %arg8[%c0_15, %c0_16], %19 {strides = array<i32>} : memref<8x128xf32, #tpu.memory_space<vmem>>, vector<8x128xf32>,
    } else {
    }
    %c0 = arith.constant 0 : index
    %c0_4 = arith.constant 0 : index
    %8 = vector.load %arg8[%c0, %c0_4] : memref<8x128xf32, #tpu.memory_space<vmem>>, vector<8x128xf32>
    %9 = arith.index_cast %arg2 : i32 to index
    %c0_5 = arith.constant 0 : index
    %c0_6 = arith.constant 0 : index
    %10 = vector.load %arg9[%9, %c0_5, %c0_6] : memref<1x8x128xbf16, #tpu.memory_space<vmem>>, vector<1x8x128xbf16>
    %11 = vector.shape_cast %10 : vector<1x8x128xbf16> to vector<8x128xbf16>
    %c0_7 = arith.constant 0 : index
    %c0_8 = arith.constant 0 : index
    %12 = vector.load %arg6[%c0_7, %c0_8] : memref<128x128xbf16, #tpu.memory_space<vmem>>, vector<128x128xbf16>
    %cst = arith.constant dense<0.000000e+00> : vector<8x128xf32>
    %13 = tpu.matmul %11, %12, %cst {dimension_numbers = #tpu.dot_dimension_numbers<[1], [0], [0], [1], [0, 0, 1, 1], [], []>} : vector<8x128xbf16>, vector<128x128xbf16>, vector<8x128xf32> -> vector<8x128xf32>
    %14 = arith.addf %8, %13 : vector<8x128xf32>
    %c0_9 = arith.constant 0 : index
    %c0_10 = arith.constant 0 : index
    %15 = vector.load %arg8[%c0_9, %c0_10] : memref<8x128xf32, #tpu.memory_space<vmem>>, vector<8x128xf32>
    tpu.vector_store %arg8[%c0_9, %c0_10], %14 {strides = array<i32>} : memref<8x128xf32, #tpu.memory_space<vmem>>, vector<8x128xf32>,
    return
  }
  func.func @transform_0(%arg0: i32, %arg1: i32, %arg2: i32) -> (i32, i32) {
    %c0_i32 = arith.constant 0 : i32
    %c0_i32_0 = arith.constant 0 : i32
    return %arg0, %c0_i32 : i32, i32
  }
  func.func @transform_1(%arg0: i32, %arg1: i32, %arg2: i32) -> (i32, i32) {
    %c0_i32 = arith.constant 0 : i32
    %c0_i32_0 = arith.constant 0 : i32
    %c0_i32_1 = arith.constant 0 : i32
    return %c0_i32, %c0_i32_0 : i32, i32
  }
  func.func @transform_2(%arg0: i32, %arg1: i32, %arg2: i32) -> (i32, i32) {
    %c0_i32 = arith.constant 0 : i32
    %c0_i32_0 = arith.constant 0 : i32
    %c0_i32_1 = arith.constant 0 : i32
    return %c0_i32, %c0_i32_0 : i32, i32
  }
  func.func @transform_3(%arg0: i32, %arg1: i32, %arg2: i32) -> (i32, i32) {
    %c0_i32 = arith.constant 0 : i32
    return %arg2, %arg1 : i32, i32
  }
  func.func @transform_4(%arg0: i32, %arg1: i32, %arg2: i32) -> (i32, i32) {
    %c0_i32 = arith.constant 0 : i32
    %c0_i32_0 = arith.constant 0 : i32
    return %c0_i32, %arg1 : i32, i32
  }
  func.func @transform_5(%arg0: i32, %arg1: i32, %arg2: i32) -> (i32, i32) {
    %c0_i32 = arith.constant 0 : i32
    return %arg0, %arg1 : i32, i32
  }
}

</mosaic_0001>

<llo_original>
// kernel: tpu_custom_call.1
$region0: #{tpu_custom_call.1}
  #allocation0 [shape = 'u32[]', space=smem, size = 0x4, offset = 0x4, fixed_abs, tag = 'smem constant byte address 0x4 - core index']
  #allocation1 [shape = 'u32[144,128]{1,0:T(1,128)}', space=vmem, size = 0x12000, scoped, tag = 'internal scratch']
  #allocation2 [shape = 'bf16[1,8,128]{2,1,0:T(8,128)(2,1)}', space=vmem, size = 0x800, scoped, tag = 'scratch operand']
  %s0 = inlined_call_operand.hbm [shape: f32[16,128], index: 0, kind: input, shape index: {}]
  %s1 = inlined_call_operand.vmem [shape: f32[1,128], index: 1, kind: input, shape index: {}]
  %s2 = inlined_call_operand.vmem [shape: f32[1,128], index: 2, kind: input, shape index: {}]
  %s3 = inlined_call_operand.hbm [shape: bf16[128,128], index: 3, kind: input, shape index: {}]
  %s4 = inlined_call_operand.vmem [shape: f32[1,128], index: 4, kind: input, shape index: {}]
  %s5 = inlined_call_operand.hbm [shape: f32[16,128], index: 5, kind: output, shape index: {}]
  %s6 = sld [smem:[#allocation0]]
  $region69: #{tpu_custom_call.1} parent=0
    _
  %s8 = ssub.s32 1, %s6
  %s9 = scalar_select 0, %s8, %s6
  $region1: #{tpu_custom_call.1} parent=0
    #allocation3 [shape = 'u8[8192]{0}', space=vmem, size = 0x2000, scoped, tag = 'input window, operand 0']
    #allocation4 [shape = 's32[2]{0}', space=sflag, size = 0x8, scoped, tag = 'scoped memory for tpu_custom_call.1']
    #allocation5 [shape = 's32[2]{0}', space=sflag, size = 0x8, scoped, tag = 'scoped memory for tpu_custom_call.1']
    #allocation6 [shape = 'u8[32768]{0}', space=vmem, size = 0x8000, scoped, tag = 'input window, operand 3, single buffered']
    #allocation7 [shape = 's32[1]{0}', space=sflag, size = 0x4, scoped, tag = 'scoped memory for tpu_custom_call.1']
    #allocation8 [shape = 'u8[8192]{0}', space=vmem, size = 0x2000, scoped, tag = 'output window, operand 0']
    %10 = vsyncpa [#allocation4], 0
    %s11 = scalar_lea.sflag [#allocation4], 1
    %12 = vsyncpa %s11, 0
    %13 = vsyncpa [#allocation7], 0
    %14 = vsyncpa [#allocation5], 0
    %s15 = scalar_lea.sflag [#allocation5], 1
    %16 = vsyncpa %s15, 0
    loop: start=0, step=1, limit=4
    $region2: #{tpu_custom_call.1} parent=1 // loop_pre_header
      _
    $region3: #{tpu_custom_call.1} parent=1 // loop_header
      %s18 = sphi 0, %s22
      %p19 = scmp.ge.s32.totalorder %s18, 4
      %s25 = sphi 0, %s44
      %s26 = sphi 0, %s40
      %s27 = sphi 0, %s36
      %s28 = sphi 0, %s25
      %s29 = sphi 0, %s26
      %s30 = sphi 0, %s27
      %s31 = sphi 0, %s28
      %s32 = sphi 0, %s29
      %s33 = sphi 0, %s30
      %s47 = sphi 0, %s49
      %s50 = sphi 0, %s47
      %s51 = sphi 0, %s50
      %s67 = sphi 0, %s51
      %s71 = sphi 0, %s71
      %s73 = sphi 0, %s71
      %s74 = sphi 0, %s73
      %s88 = sphi 0, %s74
      %s92 = sphi 0, %s92
      %s94 = sphi 0, %s92
      %s95 = sphi 0, %s94
      %s109 = sphi 0, %s95
      %s117 = sphi 0, %s119
      %s120 = sphi 0, %s117
      %s121 = sphi 0, %s120
      %s137 = sphi 0, %s121
      %s143 = sphi 0, %s145
      %s146 = sphi 0, %s143
      %s147 = sphi 0, %s146
      %s163 = sphi 0, %s147
      %s171 = sphi 0, %s173
      %s174 = sphi 0, %s171
      %s175 = sphi 0, %s174
      %s191 = sphi 0, %s175
    $region4: #{tpu_custom_call.1} parent=1 // loop_header_branch
      %21 = sbr.rel (%p19) target = $region8
    $region5: #{tpu_custom_call.1} parent=1 // loop_body
      %s23 = ssub.s32 %s18, 1
      %s24 = ssub.s32 %s18, 2
      %s34 = sadd.s32 1, %s27
      %p35 = scmp.ge.s32.totalorder %s34, 1
      %s36 = scalar_select %p35, 0, %s34
      %s37 = sadd.s32 1, %s26
      %s38 = scalar_select %p35, %s37, %s26
      %p39 = scmp.ge.s32.totalorder %s38, 1
      %s40 = scalar_select %p39, 0, %s38
      %s41 = sadd.s32 1, %s25
      %s42 = scalar_select %p39, %s41, %s25
      %p43 = scmp.ge.s32.totalorder %s42, 2
      %s44 = scalar_select %p43, 0, %s42
      %s45 = ssub.s32 %s25, %s44
      %p46 = scmp.eq.s32.totalorder %s45, 0
      %s48 = sadd.s32 %s47, 1
      %s49 = scalar_select %p46, %s47, %s48
      %p52 = pneg %p46
      %p53 = scmp.eq.s32.totalorder %s18, 1
      %p54 = por %p52, %p53
      %p55 = scmp.ne.s32.totalorder %s47, %s50
      %p56 = scmp.eq.s32.totalorder %s18, 0
      %p57 = por %p55, %p56
      %p58 = scmp.ne.s32.totalorder %s47, %s50
      %p59 = scmp.eq.s32.totalorder %s23, 1
      %p60 = por %p58, %p59
      %p61 = scmp.ne.s32.totalorder %s50, %s51
      %p62 = scmp.eq.s32.totalorder %s23, 0
      %p63 = por %p61, %p62
      %p64 = scmp.ne.s32.totalorder %s50, %s51
      %p65 = scmp.eq.s32.totalorder %s24, 1
      %p66 = por %p64, %p65
      %p68 = scmp.ne.s32.totalorder %s51, %s67
      %p69 = scmp.eq.s32.totalorder %s24, 0
      %p70 = por %p68, %p69
      %s72 = sadd.s32 %s71, 1
      %p75 = scmp.eq.s32.totalorder %s18, 1
      %p76 = scmp.ne.s32.totalorder %s71, %s73
      %p77 = scmp.eq.s32.totalorder %s18, 0
      %p78 = por %p76, %p77
      %p79 = scmp.ne.s32.totalorder %s71, %s73
      %p80 = scmp.eq.s32.totalorder %s23, 1
      %p81 = por %p79, %p80
      %p82 = scmp.ne.s32.totalorder %s73, %s74
      %p83 = scmp.eq.s32.totalorder %s23, 0
      %p84 = por %p82, %p83
      %p85 = scmp.ne.s32.totalorder %s73, %s74
      %p86 = scmp.eq.s32.totalorder %s24, 1
      %p87 = por %p85, %p86
      %p89 = scmp.ne.s32.totalorder %s74, %s88
      %p90 = scmp.eq.s32.totalorder %s24, 0
      %p91 = por %p89, %p90
      %s93 = sadd.s32 %s92, 1
      %p96 = scmp.eq.s32.totalorder %s18, 1
      %p97 = scmp.ne.s32.totalorder %s92, %s94
      %p98 = scmp.eq.s32.totalorder %s18, 0
      %p99 = por %p97, %p98
      %p100 = scmp.ne.s32.totalorder %s92, %s94
      %p101 = scmp.eq.s32.totalorder %s23, 1
      %p102 = por %p100, %p101
      %p103 = scmp.ne.s32.totalorder %s94, %s95
      %p104 = scmp.eq.s32.totalorder %s23, 0
      %p105 = por %p103, %p104
      %p106 = scmp.ne.s32.totalorder %s94, %s95
      %p107 = scmp.eq.s32.totalorder %s24, 1
      %p108 = por %p106, %p107
      %p110 = scmp.ne.s32.totalorder %s95, %s109
      %p111 = scmp.eq.s32.totalorder %s24, 0
      %p112 = por %p110, %p111
      %s113 = ssub.s32 %s27, %s36
      %s114 = ssub.s32 %s26, %s40
      %s115 = sor.u32 %s113, %s114
      %p116 = scmp.eq.s32.totalorder %s115, 0
      %s118 = sadd.s32 %s117, 1
      %s119 = scalar_select %p116, %s117, %s118
      %p122 = pneg %p116
      %p123 = scmp.eq.s32.totalorder %s18, 1
      %p124 = por %p122, %p123
      %p125 = scmp.ne.s32.totalorder %s117, %s120
      %p126 = scmp.eq.s32.totalorder %s18, 0
      %p127 = por %p125, %p126
      %p128 = scmp.ne.s32.totalorder %s117, %s120
      %p129 = scmp.eq.s32.totalorder %s23, 1
      %p130 = por %p128, %p129
      %p131 = scmp.ne.s32.totalorder %s120, %s121
      %p132 = scmp.eq.s32.totalorder %s23, 0
      %p133 = por %p131, %p132
      %p134 = scmp.ne.s32.totalorder %s120, %s121
      %p135 = scmp.eq.s32.totalorder %s24, 1
      %p136 = por %p134, %p135
      %p138 = scmp.ne.s32.totalorder %s121, %s137
      %p139 = scmp.eq.s32.totalorder %s24, 0
      %p140 = por %p138, %p139
      %s141 = ssub.s32 %s26, %s40
      %p142 = scmp.eq.s32.totalorder %s141, 0
      %s144 = sadd.s32 %s143, 1
      %s145 = scalar_select %p142, %s143, %s144
      %p148 = pneg %p142
      %p149 = scmp.eq.s32.totalorder %s18, 1
      %p150 = por %p148, %p149
      %p151 = scmp.ne.s32.totalorder %s143, %s146
      %p152 = scmp.eq.s32.totalorder %s18, 0
      %p153 = por %p151, %p152
      %p154 = scmp.ne.s32.totalorder %s143, %s146
      %p155 = scmp.eq.s32.totalorder %s23, 1
      %p156 = por %p154, %p155
      %p157 = scmp.ne.s32.totalorder %s146, %s147
      %p158 = scmp.eq.s32.totalorder %s23, 0
      %p159 = por %p157, %p158
      %p160 = scmp.ne.s32.totalorder %s146, %s147
      %p161 = scmp.eq.s32.totalorder %s24, 1
      %p162 = por %p160, %p161
      %p164 = scmp.ne.s32.totalorder %s147, %s163
      %p165 = scmp.eq.s32.totalorder %s24, 0
      %p166 = por %p164, %p165
      %s167 = ssub.s32 %s25, %s44
      %s168 = ssub.s32 %s26, %s40
      %s169 = sor.u32 %s167, %s168
      %p170 = scmp.eq.s32.totalorder %s169, 0
      %s172 = sadd.s32 %s171, 1
      %s173 = scalar_select %p170, %s171, %s172
      %p176 = pneg %p170
      %p177 = scmp.eq.s32.totalorder %s18, 1
      %p178 = por %p176, %p177
      %p179 = scmp.ne.s32.totalorder %s171, %s174
      %p180 = scmp.eq.s32.totalorder %s18, 0
      %p181 = por %p179, %p180
      %p182 = scmp.ne.s32.totalorder %s171, %s174
      %p183 = scmp.eq.s32.totalorder %s23, 1
      %p184 = por %p182, %p183
      %p185 = scmp.ne.s32.totalorder %s174, %s175
      %p186 = scmp.eq.s32.totalorder %s23, 0
      %p187 = por %p185, %p186
      %p188 = scmp.ne.s32.totalorder %s174, %s175
      %p189 = scmp.eq.s32.totalorder %s24, 1
      %p190 = por %p188, %p189
      %p192 = scmp.ne.s32.totalorder %s175, %s191
      %p193 = scmp.eq.s32.totalorder %s24, 0
      %p194 = por %p192, %p193
      %p195 = scmp.le.s32.totalorder 1, %s18
      %p196 = scmp.lt.s32.totalorder %s18, 3
      %p197 = pnand %p195, %p196
      %p198 = pneg %p197
      // Predicated region
      $region9: #{tpu_custom_call.1} parent=5 // pred_check
        _
      $region10: #{tpu_custom_call.1} parent=5 // pred_check_branch
        %200 = sbr.rel (%p197) target = $region12
      $region11: #{tpu_custom_call.1} parent=5 // pred_region
        %s201 = ssub.s32 %s18, 1
        // Predicated region
        $region13: #{tpu_custom_call.1} parent=11 // pred_check
          %p202 = pneg %p84
        $region14: #{tpu_custom_call.1} parent=11 // pred_check_branch
          %204 = sbr.rel (%p202) target = $region16
        $region15: #{tpu_custom_call.1} parent=11 // pred_region
          _
        $region16: #{tpu_custom_call.1} parent=11 // pred_fallthru
          _
        // Predicated region
        $region17: #{tpu_custom_call.1} parent=11 // pred_check
          %p205 = pneg %p105
        $region18: #{tpu_custom_call.1} parent=11 // pred_check_branch
          %207 = sbr.rel (%p205) target = $region20
        $region19: #{tpu_custom_call.1} parent=11 // pred_region
          _
        $region20: #{tpu_custom_call.1} parent=11 // pred_fallthru
          _
        // Predicated region
        $region21: #{tpu_custom_call.1} parent=11 // pred_check
          %p208 = pneg %p133
        $region22: #{tpu_custom_call.1} parent=11 // pred_check_branch
          %210 = sbr.rel (%p208) target = $region24
        $region23: #{tpu_custom_call.1} parent=11 // pred_region
          %s211 = smul.u32 16, %s30
          %s213 = ssub.s32 1024, 1024
          %214 = vsyncadd [#allocation7], %s213
          %s215 = sadd.s32 %s29, %s211
          %s216 = smul.addr %s215, 64
          %s217 = scalar_lea.hbm %s3, %s216
          %s218 = sshll.u32 [#allocation6], 4
          %s219 = int_to_ptr.vmem [resolvable:$true] %s218
          %224 = dma.hbm_to_vmem [thread:$0]  %s217, 1024, %s219, [#allocation7], 64, 64, 4
        $region24: #{tpu_custom_call.1} parent=11 // pred_fallthru
          _
        // Predicated region
        $region25: #{tpu_custom_call.1} parent=11 // pred_check
          %p225 = pneg %p159
        $region26: #{tpu_custom_call.1} parent=11 // pred_check_branch
          %227 = sbr.rel (%p225) target = $region28
        $region27: #{tpu_custom_call.1} parent=11 // pred_region
          %p228 = scmp.lt.s32.totalorder %s29, 0
          %s229 = scalar_select %p228, %s29, 0
          %s230 = scalar_lea.vmem %s4, %s229
        $region28: #{tpu_custom_call.1} parent=11 // pred_fallthru
          _
      $region12: #{tpu_custom_call.1} parent=5 // pred_fallthru
        _
      %p231 = scmp.lt.s32.totalorder %s18, 2
      // Predicated region
      $region29: #{tpu_custom_call.1} parent=5 // pred_check
        %p232 = pneg %p231
      $region30: #{tpu_custom_call.1} parent=5 // pred_check_branch
        %234 = sbr.rel (%p232) target = $region32
      $region31: #{tpu_custom_call.1} parent=5 // pred_region
        // Predicated region
        $region33: #{tpu_custom_call.1} parent=31 // pred_check
          %p235 = pneg %p57
        $region34: #{tpu_custom_call.1} parent=31 // pred_check_branch
          %237 = sbr.rel (%p235) target = $region36
        $region35: #{tpu_custom_call.1} parent=31 // pred_region
          %s238 = sand.u32 %s47, 1
          %s239 = scalar_lea.sflag [#allocation4], %s238
          %s240 = sand.u32 %s47, 1
          %s241 = smul.addr %s240, 8
          %s242 = scalar_lea.vmem [#allocation3], %s241
          %s244 = ssub.s32 128, 128
          %245 = vsyncadd %s239, %s244
          %s246 = smul.addr %s25, 128
          %s247 = scalar_lea.hbm %s0, %s246
          %s249 = sshll.u32 %s242, 4
          %s250 = int_to_ptr.vmem [resolvable:$true] %s249
          %252 = dma.hbm_to_vmem [thread:$0]  %s247, 128, %s250, %s239
        $region36: #{tpu_custom_call.1} parent=31 // pred_fallthru
          _
      $region32: #{tpu_custom_call.1} parent=5 // pred_fallthru
        _
      %p253 = scmp.le.s32.totalorder 1, %s18
      %p254 = scmp.lt.s32.totalorder %s18, 3
      %p255 = pnand %p253, %p254
      %p256 = pneg %p255
      // Predicated region
      $region37: #{tpu_custom_call.1} parent=5 // pred_check
        _
      $region38: #{tpu_custom_call.1} parent=5 // pred_check_branch
        %258 = sbr.rel (%p255) target = $region40
      $region39: #{tpu_custom_call.1} parent=5 // pred_region
        %s259 = ssub.s32 %s18, 1
        %s260 = sand.u32 %s50, 1
        %s261 = scalar_lea.sflag [#allocation4], %s260
        %s262 = sand.u32 %s50, 1
        %s263 = smul.addr %s262, 8
        %s264 = scalar_lea.vmem [#allocation3], %s263
        // Predicated region
        $region41: #{tpu_custom_call.1} parent=39 // pred_check
          %p265 = pneg %p63
        $region42: #{tpu_custom_call.1} parent=39 // pred_check_branch
          %267 = sbr.rel (%p265) target = $region44
        $region43: #{tpu_custom_call.1} parent=39 // pred_region
          %268 = dma.done %s261, 128
        $region44: #{tpu_custom_call.1} parent=39 // pred_fallthru
          _
        // Predicated region
        $region45: #{tpu_custom_call.1} parent=39 // pred_check
          %p269 = pneg %p133
        $region46: #{tpu_custom_call.1} parent=39 // pred_check_branch
          %271 = sbr.rel (%p269) target = $region48
        $region47: #{tpu_custom_call.1} parent=39 // pred_region
          %272 = dma.done [#allocation7], 1024
        $region48: #{tpu_custom_call.1} parent=39 // pred_fallthru
          _
        %s273 = sand.u32 %s50, 1
        %s274 = scalar_lea.sflag [#allocation4], %s273
        %s275 = sand.u32 %s50, 1
        %s276 = smul.addr %s275, 8
        %s277 = scalar_lea.vmem [#allocation3], %s276
        %p278 = pneg %p63
        %p279 = pneg %p60
        %p280 = pneg %p84
        %p281 = pneg %p81
        %p282 = pneg %p105
        %p283 = pneg %p102
        %p284 = pneg %p133
        %p285 = pneg %p130
        %p286 = scmp.lt.s32.totalorder %s29, 0
        %s287 = scalar_select %p286, %s29, 0
        %s288 = scalar_lea.vmem %s4, %s287
        %p289 = pneg %p159
        %p290 = pneg %p156
        %p291 = pneg %p187
        %p292 = pneg %p184
        %s293 = sand.u32 %s174, 1
        %s294 = scalar_lea.sflag [#allocation5], %s293
        %s295 = sand.u32 %s174, 1
        %s296 = smul.addr %s295, 8
        %s297 = scalar_lea.vmem [#allocation8], %s296
        %s298 = smul.u32 16, %s30
        %p299 = scmp.lt.s32.totalorder %s29, 0
        %s300 = scalar_select %p299, %s29, 0
        %s301 = scalar_lea.vmem %s4, %s300
        %p303 = scmp.eq.s32.totalorder %s29, 0
        %p304 = scmp.eq.s32.totalorder %s30, 0
        %p305 = pnand %p303, %p304
        %p306 = pneg %p305
        // Predicated region
        $region49: #{tpu_custom_call.1} parent=39 // pred_check
          _
        $region50: #{tpu_custom_call.1} parent=39 // pred_check_branch
          %308 = sbr.rel (%p305) target = $region52
        $region51: #{tpu_custom_call.1} parent=39 // pred_region
          %v309 = vld [vmem:[%s264] sm:$0xff]
          %310 = vadd.xlane.f32.xlu0 %v309
          %v311 = vpop.xlane.xlu0 %310
          %v312 = vadd.f32 %v311, 0.0
          %v313 = vmul.f32 %v309, %v309
          %314 = vadd.xlane.f32.xlu0 %v313
          %v315 = vpop.xlane.xlu0 %314
          %v316 = vadd.f32 %v315, 0.0
          %v317 = vmul.f32 %v312, 0.03125
          %v318 = vmul.f32 %v316, 0.03125
          %v319 = vmul.f32 %v317, %v317
          %v320 = vsub.f32 %v318, %v319
          %v321 = vadd.f32 %v320, 1e-05
          %v322 = vrsqrt.pop %v321
          %v323 = vld [vmem:[%s1] sm:$0x1]
          %v324 = vld [vmem:[%s2] sm:$0x1]
          %v325 = vsub.f32 %v309, %v317
          %v326 = vmul.f32 %v325, %v322
          %v328 = vlaneseq
          %v329 = vshrl.u32 %v328, 7
          %v330 = vsub.s32 0, %v329
          %v331 = vrot.slane %v323, %v330
          %v333 = vmul.f32 %v326, %v331
          %v335 = vlaneseq
          %v336 = vshrl.u32 %v335, 7
          %v337 = vsub.s32 0, %v336
          %v338 = vrot.slane %v324, %v337
          %v340 = vadd.f32 %v333, %v338
          %v341 = vpack.c.bf16 %v340, %v340
          %342 = vst [vmem:[#allocation2] sm:$0xf] %v341
        $region52: #{tpu_custom_call.1} parent=39 // pred_fallthru
          _
        // Predicated region
        $region53: #{tpu_custom_call.1} parent=39 // pred_check
          %p343 = pneg %p304
        $region54: #{tpu_custom_call.1} parent=39 // pred_check_branch
          %345 = sbr.rel (%p343) target = $region56
        $region55: #{tpu_custom_call.1} parent=39 // pred_region
          %v346 = vld [vmem:[%s264] sm:$0xff]
          %v347 = vld [vmem:[%s301] sm:$0x1]
          %v349 = vlaneseq
          %v350 = vshrl.u32 %v349, 7
          %v351 = vsub.s32 0, %v350
          %v352 = vrot.slane %v347, %v351
          %v354 = vadd.f32 %v346, %v352
          %355 = vst [vmem:[%s297] sm:$0xff] %v354
        $region56: #{tpu_custom_call.1} parent=39 // pred_fallthru
          _
        %v356 = vld [vmem:[%s297] sm:$0xff]
        %s357 = smul.addr %s30, 4
        %s358 = scalar_lea.vmem [#allocation2], %s357
        %v359 = vld [vmem:[%s358] sm:$0xf]
        %v360 = vld [vmem:[#allocation6] sm:$0xf]
        %v361 = vld [vmem:[#allocation6 + $0x4] sm:$0xf]
        %v362 = vld [vmem:[#allocation6 + $0x8] sm:$0xf]
        %v363 = vld [vmem:[#allocation6 + $0xc] sm:$0xf]
        %v364 = vld [vmem:[#allocation6 + $0x10] sm:$0xf]
        %v365 = vld [vmem:[#allocation6 + $0x14] sm:$0xf]
        %v366 = vld [vmem:[#allocation6 + $0x18] sm:$0xf]
        %v367 = vld [vmem:[#allocation6 + $0x1c] sm:$0xf]
        %v368 = vld [vmem:[#allocation6 + $0x20] sm:$0xf]
        %v369 = vld [vmem:[#allocation6 + $0x24] sm:$0xf]
        %v370 = vld [vmem:[#allocation6 + $0x28] sm:$0xf]
        %v371 = vld [vmem:[#allocation6 + $0x2c] sm:$0xf]
        %v372 = vld [vmem:[#allocation6 + $0x30] sm:$0xf]
        %v373 = vld [vmem:[#allocation6 + $0x34] sm:$0xf]
        %v374 = vld [vmem:[#allocation6 + $0x38] sm:$0xf]
        %v375 = vld [vmem:[#allocation6 + $0x3c] sm:$0xf]
        %v392 = vunpack.c.l.b16 %v360
        %v393 = vunpack.c.l.b16 %v361
        %v394 = vunpack.c.l.b16 %v362
        %v395 = vunpack.c.l.b16 %v363
        %v396 = vunpack.c.l.b16 %v364
        %v397 = vunpack.c.l.b16 %v365
        %v398 = vunpack.c.l.b16 %v366
        %v399 = vunpack.c.l.b16 %v367
        %v400 = vunpack.c.l.b16 %v368
        %v401 = vunpack.c.l.b16 %v369
        %v402 = vunpack.c.l.b16 %v370
        %v403 = vunpack.c.l.b16 %v371
        %v404 = vunpack.c.l.b16 %v372
        %v405 = vunpack.c.l.b16 %v373
        %v406 = vunpack.c.l.b16 %v374
        %v407 = vunpack.c.l.b16 %v375
        %v408 = vpack.c.b16 %v393, %v392
        %v409 = vpack.c.b16 %v395, %v394
        %v410 = vpack.c.b16 %v397, %v396
        %v411 = vpack.c.b16 %v399, %v398
        %v412 = vpack.c.b16 %v401, %v400
        %v413 = vpack.c.b16 %v403, %v402
        %v414 = vpack.c.b16 %v405, %v404
        %v415 = vpack.c.b16 %v407, %v406
        %424 = vmatprep.subr.bf16.mxu0 0
        %425 = vmatpush1.bf16.msra.mxu0 %v408
        %426 = vmatprep.subr.bf16.mxu0 0
        %427 = vmatpush1.bf16.msra.mxu0 %v409
        %428 = vmatprep.subr.bf16.mxu0 0
        %429 = vmatpush1.bf16.msra.mxu0 %v410
        %430 = vmatprep.subr.bf16.mxu0 0
        %431 = vmatpush1.bf16.msra.mxu0 %v411
        %432 = vmatprep.subr.bf16.mxu0 0
        %433 = vmatpush1.bf16.msra.mxu0 %v412
        %434 = vmatprep.subr.bf16.mxu0 0
        %435 = vmatpush1.bf16.msra.mxu0 %v413
        %436 = vmatprep.subr.bf16.mxu0 0
        %437 = vmatpush1.bf16.msra.mxu0 %v414
        %438 = vmatprep.subr.bf16.mxu0 0
        %439 = vmatpush1.bf16.msra.mxu0 %v415
        %440 = vmatprep.subr.bf16.mxu0 0
        %441 = vmatpush1.bf16.msra.mxu0 0
        %442 = vmatprep.subr.bf16.mxu0 0
        %443 = vmatpush1.bf16.msra.mxu0 0
        %444 = vmatprep.subr.bf16.mxu0 0
        %445 = vmatpush1.bf16.msra.mxu0 0
        %446 = vmatprep.subr.bf16.mxu0 0
        %447 = vmatpush1.bf16.msra.mxu0 0
        %448 = vmatprep.subr.bf16.mxu0 0
        %449 = vmatpush1.bf16.msra.mxu0 0
        %450 = vmatprep.subr.bf16.mxu0 0
        %451 = vmatpush1.bf16.msra.mxu0 0
        %452 = vmatprep.subr.bf16.mxu0 0
        %453 = vmatpush1.bf16.msra.mxu0 0
        %454 = vmatprep.subr.bf16.mxu0 0
        %455 = vmatpush1.bf16.msra.mxu0 0
        %456 = vmatprep.mubr.bf16.mxu0 0
        %457 = vmatmul.mubr.bf16.gmra.mrb[0].mxu0 %v359
        %v458 = vpop.f32.mrb[0].mxu0
        %v459 = vadd.f32 0.0, %v458
        %v460 = vpop.f32.mrb[0].mxu0
        %v461 = vpop.f32.mrb[0].mxu0
        %v462 = vpop.f32.mrb[0].mxu0
        %463 = vdwg.mxu0
        %v464 = vadd.f32 %v356, %v459
        %465 = vst [vmem:[%s297] sm:$0xff] %v464
        %s466 = sand.u32 %s174, 1
        %s467 = scalar_lea.sflag [#allocation5], %s466
        %s468 = sand.u32 %s174, 1
        %s469 = smul.addr %s468, 8
        %s470 = scalar_lea.vmem [#allocation8], %s469
        // Predicated region
        $region57: #{tpu_custom_call.1} parent=39 // pred_check
          %p471 = pneg %p184
        $region58: #{tpu_custom_call.1} parent=39 // pred_check_branch
          %473 = sbr.rel (%p471) target = $region60
        $region59: #{tpu_custom_call.1} parent=39 // pred_region
          %s475 = ssub.s32 128, 128
          %476 = vsyncadd %s467, %s475
          %s477 = sadd.s32 %s29, %s28
          %s478 = smul.addr %s477, 128
          %s479 = scalar_lea.hbm %s5, %s478
          %s481 = sshll.u32 %s470, 4
          %s482 = int_to_ptr.vmem [resolvable:$true] %s481
          %484 = dma.vmem_to_hbm [thread:$0]  %s482, 128, %s479, %s467
        $region60: #{tpu_custom_call.1} parent=39 // pred_fallthru
          _
      $region40: #{tpu_custom_call.1} parent=5 // pred_fallthru
        _
      %p485 = scmp.le.s32.totalorder 2, %s18
      // Predicated region
      $region61: #{tpu_custom_call.1} parent=5 // pred_check
        %p486 = pneg %p485
      $region62: #{tpu_custom_call.1} parent=5 // pred_check_branch
        %488 = sbr.rel (%p486) target = $region64
      $region63: #{tpu_custom_call.1} parent=5 // pred_region
        %s489 = ssub.s32 %s18, 2
        // Predicated region
        $region65: #{tpu_custom_call.1} parent=63 // pred_check
          %p490 = pneg %p190
        $region66: #{tpu_custom_call.1} parent=63 // pred_check_branch
          %492 = sbr.rel (%p490) target = $region68
        $region67: #{tpu_custom_call.1} parent=63 // pred_region
          %s493 = sand.u32 %s175, 1
          %s494 = scalar_lea.sflag [#allocation5], %s493
          %s495 = sand.u32 %s175, 1
          %s496 = smul.addr %s495, 8
          %s497 = scalar_lea.vmem [#allocation8], %s496
          %498 = dma.done %s494, 128
        $region68: #{tpu_custom_call.1} parent=63 // pred_fallthru
          _
      $region64: #{tpu_custom_call.1} parent=5 // pred_fallthru
        _
    $region6: #{tpu_custom_call.1} parent=1 // loop_footer
      %s22 = sadd.s32 1, %s18
    $region7: #{tpu_custom_call.1} parent=1 // loop_footer_branch
      %17 = sbr.rel target = $region3
    $region8: #{tpu_custom_call.1} parent=1 // loop_exit
      _
    %499 = vsyncpa [#allocation4], 1
    %s500 = scalar_lea.sflag [#allocation4], 1
    %501 = vsyncpa %s500, 1
    %502 = vsyncpa [#allocation7], 1
    %503 = vsyncpa [#allocation5], 1
    %s504 = scalar_lea.sflag [#allocation5], 1
    %505 = vsyncpa %s504, 1

</llo_original>
